<compile_context>
chip_gen: v7x
topology: tpu7x:2x2x1
jax: 0.10.0
libtpu: 0.0.40
codegen_flags: <defaults>
</compile_context>

<pallas_src>
import jax
import jax.numpy as jnp
from jax.experimental import pallas as pl
from jax.experimental.pallas import tpu as pltpu


_VMEM_INPUT_BUDGET = 24 * 1024 * 1024   # bytes for 2 inputs x 2 pipeline buffers
_VMEM_LIMIT_BYTES = 32 * 1024 * 1024    # scoped VMEM limit (safe on v5e/v6e/v7x)
_MAX_TILE_ROWS = 1024


def _wce_kernel(y_ref, yhat_ref, w_ref, o_ref):
    # y_ref, yhat_ref: (TILE_N, C) native dtype;  w_ref: (1, C) f32;  o_ref: (TILE_N, 1) f32
    logits = y_ref[...].astype(jnp.float32)
    target = yhat_ref[...].astype(jnp.float32)
    weight = w_ref[...]                                   # (1, C), broadcasts over rows

    # numerically stable log-softmax pieces along the class (lane) axis
    m = jnp.max(logits, axis=-1, keepdims=True)           # (TILE_N, 1)
    shifted = logits - m                                   # (TILE_N, C)
    lse = jnp.log(jnp.sum(jnp.exp(shifted), axis=-1, keepdims=True))  # (TILE_N, 1)

    # weighted soft targets; avoid materializing log_p = shifted - lse:
    #   loss = -sum(wt * (shifted - lse)) = lse * sum(wt) - sum(wt * shifted)
    wt = weight * target                                   # (TILE_N, C)
    wt_sum = jnp.sum(wt, axis=-1, keepdims=True)           # (TILE_N, 1)
    wt_dot = jnp.sum(wt * shifted, axis=-1, keepdims=True) # (TILE_N, 1)
    o_ref[...] = lse * wt_sum - wt_dot


def _round_up(x, m):
    return ((x + m - 1) // m) * m


def _sublane_pack(dtype):
    # rows per vreg sublane group: 8 for 4-byte, 16 for 2-byte, 32 for 1-byte
    return max(8, 32 // jnp.dtype(dtype).itemsize)


def wce_loss(y, y_hat, weight=None):
    """Pallas implementation of WceLoss.forward(y, y_hat).

    y:      (N, C) logits (any float dtype; NOT upcast before the kernel)
    y_hat:  (N, C) soft targets (class probabilities)
    weight: optional (C,) per-class weights (None -> ones, like PyTorch)
    returns (N,) float32 per-sample loss
    """
    n, c = y.shape
    assert y_hat.shape == (n, c), "y and y_hat must both be (N, C)"

    if weight is None:
        w2d = jnp.ones((1, c), dtype=jnp.float32)
    else:
        w2d = jnp.asarray(weight, dtype=jnp.float32).reshape(1, c)

    # ---- choose TILE_N: biggest tile that keeps 2 inputs x 2 buffers in budget
    pack = max(_sublane_pack(y.dtype), _sublane_pack(y_hat.dtype))
    bytes_per_row = c * (jnp.dtype(y.dtype).itemsize + jnp.dtype(y_hat.dtype).itemsize)
    max_rows = max(pack, _VMEM_INPUT_BUDGET // (2 * bytes_per_row))
    tile_n = min(_MAX_TILE_ROWS, max_rows, _round_up(n, pack))
    tile_n = max(pack, (tile_n // pack) * pack)

    # ---- pad N so every grid step gets a full (tile_n, C) block
    n_pad = _round_up(n, tile_n)
    if n_pad != n:
        y = jnp.pad(y, ((0, n_pad - n), (0, 0)))
        y_hat = jnp.pad(y_hat, ((0, n_pad - n), (0, 0)))

    grid = (n_pad // tile_n,)
    out = pl.pallas_call(
        _wce_kernel,
        out_shape=jax.ShapeDtypeStruct((n_pad, 1), jnp.float32),
        grid=grid,
        in_specs=[
            pl.BlockSpec((tile_n, c), lambda i: (i, 0)),
            pl.BlockSpec((tile_n, c), lambda i: (i, 0)),
            pl.BlockSpec((1, c), lambda i: (0, 0)),  # weight resident, one DMA total
        ],
        out_specs=pl.BlockSpec((tile_n, 1), lambda i: (i, 0)),
        compiler_params=pltpu.CompilerParams(
            dimension_semantics=("parallel",),       # shard tiles across TCs on v7x
            vmem_limit_bytes=_VMEM_LIMIT_BYTES,
        ),
    )(y, y_hat, w2d)
    return out[:n, 0]


def _wce_ref(y, y_hat, weight):
    """Pure-JAX reference for sanity checking."""
    log_p = jax.nn.log_softmax(y.astype(jnp.float32), axis=-1)
    w = jnp.asarray(weight, dtype=jnp.float32)
    return -jnp.sum(w[None, :] * y_hat.astype(jnp.float32) * log_p, axis=-1)


if __name__ == "__main__":
    key = jax.random.PRNGKey(0)
    k1, k2, k3, k4 = jax.random.split(key, 4)

    # --- test 1: f32 inputs, N multiple of 8 -------------------------------
    N, C = 8, 32
    y = jax.random.normal(k1, (N, C), dtype=jnp.float32)              # logits
    y_hat = jax.nn.softmax(jax.random.normal(k2, (N, C)), axis=-1)    # soft targets
    weight = 0.5 + jnp.arange(C, dtype=jnp.float32) / C               # per-class weights

    loss = wce_loss(y, y_hat, weight)
    jax.block_until_ready(loss)
    ref = _wce_ref(y, y_hat, weight)
    assert loss.shape == (N,)
    assert jnp.allclose(loss, ref, atol=1e-5, rtol=1e-5)

    # --- test 2: bf16 inputs, ragged N (exercises padding + native-width DMA)
    N2, C2 = 12, 32
    y2 = jax.random.normal(k3, (N2, C2), dtype=jnp.float32).astype(jnp.bfloat16)
    y2_hat = jax.nn.softmax(jax.random.normal(k4, (N2, C2)), axis=-1).astype(jnp.bfloat16)

    loss2 = wce_loss(y2, y2_hat, weight[:C2])
    jax.block_until_ready(loss2)
    ref2 = _wce_ref(y2, y2_hat, weight[:C2])   # same bf16->f32 cast as the kernel
    assert loss2.shape == (N2,)
    assert jnp.allclose(loss2, ref2, atol=1e-4, rtol=1e-4)

    print("KERNEL_OK")
</pallas_src>

<mosaic_0001>
module attributes {stable_mosaic.version = 11 : i64} {
  func.func @_wce_kernel(%arg0: i32, %arg1: memref<8x32xf32, #tpu.memory_space<vmem>>, %arg2: memref<8x32xf32, #tpu.memory_space<vmem>>, %arg3: memref<1x32xf32, #tpu.memory_space<vmem>>, %arg4: memref<8x1xf32, #tpu.memory_space<vmem>>) attributes {dimension_semantics = [#tpu.dimension_semantics<parallel>], iteration_bounds = array<i64: 1>, scalar_prefetch = 0 : i64, scratch_operands = 0 : i64, tpu.core_type = #tpu.core_type<tc>, window_params = [{transform_indices = @transform_0, window_bounds = array<i64: 8, 32>}, {transform_indices = @transform_1, window_bounds = array<i64: 8, 32>}, {pipeline_mode = #tpu.pipeline_mode<synchronous>, transform_indices = @transform_2, window_bounds = array<i64: 1, 32>}, {transform_indices = @transform_3, window_bounds = array<i64: 8, 1>}]} {
    %c0 = arith.constant 0 : index
    %c0_0 = arith.constant 0 : index
    %0 = vector.load %arg1[%c0, %c0_0] : memref<8x32xf32, #tpu.memory_space<vmem>>, vector<8x32xf32>
    %c0_1 = arith.constant 0 : index
    %c0_2 = arith.constant 0 : index
    %1 = vector.load %arg2[%c0_1, %c0_2] : memref<8x32xf32, #tpu.memory_space<vmem>>, vector<8x32xf32>
    %c0_3 = arith.constant 0 : index
    %c0_4 = arith.constant 0 : index
    %2 = vector.load %arg3[%c0_3, %c0_4] : memref<1x32xf32, #tpu.memory_space<vmem>>, vector<1x32xf32>
    %cst = arith.constant dense<0xFF800000> : vector<8xf32>
    %3 = vector.multi_reduction <maximumf>, %0, %cst [1] : vector<8x32xf32> to vector<8xf32>
    %4 = vector.shape_cast %3 : vector<8xf32> to vector<8x1xf32>
    %5 = vector.broadcast %4 : vector<8x1xf32> to vector<8x32xf32>
    %6 = arith.subf %0, %5 : vector<8x32xf32>
    %7 = math.exp %6 : vector<8x32xf32>
    %cst_5 = arith.constant dense<0.000000e+00> : vector<8xf32>
    %8 = vector.multi_reduction <add>, %7, %cst_5 [1] : vector<8x32xf32> to vector<8xf32>
    %9 = vector.shape_cast %8 : vector<8xf32> to vector<8x1xf32>
    %10 = math.log %9 : vector<8x1xf32>
    %11 = vector.broadcast %2 : vector<1x32xf32> to vector<8x32xf32>
    %12 = arith.mulf %11, %1 : vector<8x32xf32>
    %cst_6 = arith.constant dense<0.000000e+00> : vector<8xf32>
    %13 = vector.multi_reduction <add>, %12, %cst_6 [1] : vector<8x32xf32> to vector<8xf32>
    %14 = vector.shape_cast %13 : vector<8xf32> to vector<8x1xf32>
    %15 = arith.mulf %12, %6 : vector<8x32xf32>
    %cst_7 = arith.constant dense<0.000000e+00> : vector<8xf32>
    %16 = vector.multi_reduction <add>, %15, %cst_7 [1] : vector<8x32xf32> to vector<8xf32>
    %17 = vector.shape_cast %16 : vector<8xf32> to vector<8x1xf32>
    %18 = arith.mulf %10, %14 : vector<8x1xf32>
    %19 = arith.subf %18, %17 : vector<8x1xf32>
    %c0_8 = arith.constant 0 : index
    %c0_9 = arith.constant 0 : index
    %20 = vector.load %arg4[%c0_8, %c0_9] : memref<8x1xf32, #tpu.memory_space<vmem>>, vector<8x1xf32>
    tpu.vector_store %arg4[%c0_8, %c0_9], %19 {strides = array<i32>} : memref<8x1xf32, #tpu.memory_space<vmem>>, vector<8x1xf32>,
    return
  }
  func.func @transform_0(%arg0: i32) -> (i32, i32) {
    %c0_i32 = arith.constant 0 : i32
    %c0_i32_0 = arith.constant 0 : i32
    return %arg0, %c0_i32 : i32, i32
  }
  func.func @transform_1(%arg0: i32) -> (i32, i32) {
    %c0_i32 = arith.constant 0 : i32
    %c0_i32_0 = arith.constant 0 : i32
    return %arg0, %c0_i32 : i32, i32
  }
  func.func @transform_2(%arg0: i32) -> (i32, i32) {
    %c0_i32 = arith.constant 0 : i32
    %c0_i32_0 = arith.constant 0 : i32
    %c0_i32_1 = arith.constant 0 : i32
    return %c0_i32, %c0_i32_0 : i32, i32
  }
  func.func @transform_3(%arg0: i32) -> (i32, i32) {
    %c0_i32 = arith.constant 0 : i32
    %c0_i32_0 = arith.constant 0 : i32
    return %arg0, %c0_i32 : i32, i32
  }
}

</mosaic_0001>

<llo_original>
// kernel: tpu_custom_call.1
$region0: #{tpu_custom_call.1}
  #allocation0 [shape = 'u32[]', space=smem, size = 0x4, offset = 0x4, fixed_abs, tag = 'smem constant byte address 0x4 - core index']
  #allocation1 [shape = 'u32[144,128]{1,0:T(1,128)}', space=vmem, size = 0x12000, scoped, tag = 'internal scratch']
  %s0 = inlined_call_operand.hbm [shape: f32[8,32], index: 0, kind: input, shape index: {}]
  %s1 = inlined_call_operand.hbm [shape: f32[8,32], index: 1, kind: input, shape index: {}]
  %s2 = inlined_call_operand.vmem [shape: f32[1,32], index: 2, kind: input, shape index: {}]
  %s3 = inlined_call_operand.vmem [shape: f32[8,1], index: 3, kind: output, shape index: {}]
  %s4 = sld [smem:[#allocation0]]
  $region30: #{tpu_custom_call.1} parent=0
    _
  %s6 = ssub.s32 1, %s4
  %s7 = scalar_select 0, %s6, %s4
  $region1: #{tpu_custom_call.1} parent=0
    #allocation2 [shape = 'u8[4096]{0}', space=vmem, size = 0x1000, scoped, tag = 'input window, operand 0, single buffered']
    #allocation3 [shape = 's32[1]{0}', space=sflag, size = 0x4, scoped, tag = 'scoped memory for tpu_custom_call.1']
    #allocation4 [shape = 'u8[4096]{0}', space=vmem, size = 0x1000, scoped, tag = 'input window, operand 1, single buffered']
    #allocation5 [shape = 's32[1]{0}', space=sflag, size = 0x4, scoped, tag = 'scoped memory for tpu_custom_call.1']
    %8 = vsyncpa [#allocation3], 0
    %9 = vsyncpa [#allocation5], 0
    // Predicated region
    $region2: #{tpu_custom_call.1} parent=1 // pred_check
      _
    $region3: #{tpu_custom_call.1} parent=1 // pred_check_branch
      %11 = sbr.rel (0) target = $region5
    $region4: #{tpu_custom_call.1} parent=1 // pred_region
      %s13 = ssub.s32 128, 128
      %14 = vsyncadd [#allocation3], %s13
      %s16 = sshll.u32 [#allocation2], 4
      %s17 = int_to_ptr.vmem [resolvable:$true] %s16
      %19 = dma.hbm_to_vmem [thread:$0]  %s0, 128, %s17, [#allocation3]
    $region5: #{tpu_custom_call.1} parent=1 // pred_fallthru
      _
    // Predicated region
    $region6: #{tpu_custom_call.1} parent=1 // pred_check
      _
    $region7: #{tpu_custom_call.1} parent=1 // pred_check_branch
      %21 = sbr.rel (0) target = $region9
    $region8: #{tpu_custom_call.1} parent=1 // pred_region
      %s23 = ssub.s32 128, 128
      %24 = vsyncadd [#allocation5], %s23
      %s26 = sshll.u32 [#allocation4], 4
      %s27 = int_to_ptr.vmem [resolvable:$true] %s26
      %29 = dma.hbm_to_vmem [thread:$0]  %s1, 128, %s27, [#allocation5]
    $region9: #{tpu_custom_call.1} parent=1 // pred_fallthru
      _
    // Predicated region
    $region10: #{tpu_custom_call.1} parent=1 // pred_check
      _
    $region11: #{tpu_custom_call.1} parent=1 // pred_check_branch
      %31 = sbr.rel (0) target = $region13
    $region12: #{tpu_custom_call.1} parent=1 // pred_region
      _
    $region13: #{tpu_custom_call.1} parent=1 // pred_fallthru
      _
    // Predicated region
    $region14: #{tpu_custom_call.1} parent=1 // pred_check
      _
    $region15: #{tpu_custom_call.1} parent=1 // pred_check_branch
      %33 = sbr.rel (0) target = $region17
    $region16: #{tpu_custom_call.1} parent=1 // pred_region
      %34 = dma.done [#allocation3], 128
    $region17: #{tpu_custom_call.1} parent=1 // pred_fallthru
      _
    // Predicated region
    $region18: #{tpu_custom_call.1} parent=1 // pred_check
      _
    $region19: #{tpu_custom_call.1} parent=1 // pred_check_branch
      %36 = sbr.rel (0) target = $region21
    $region20: #{tpu_custom_call.1} parent=1 // pred_region
      %37 = dma.done [#allocation5], 128
    $region21: #{tpu_custom_call.1} parent=1 // pred_fallthru
      _
    %v38 = vld [vmem:[#allocation2] sm:$0xff]
    %v39 = vld [vmem:[#allocation4] sm:$0xff]
    %v40 = vld [vmem:[%s2] sm:$0x1]
    %vm41 = vcmask 261120
    %v42 = vsel %vm41, %v38, -inf
    %43 = vmax.xlane.f32.xlu0 %v42
    %v44 = vpop.xlane.xlu0 %43
    %v45 = vsub.f32 %v38, %v44
    %v46 = vmul.f32 %v45, 1.442695
    %v47 = vpow.pop %v46
    %v48 = vsel %vm41, %v47, 0.0
    %49 = vadd.xlane.f32.xlu0 %v48
    %v50 = vpop.xlane.xlu0 %49
    %v51 = vlog2.pop %v50
    %v52 = vmul.f32 %v51, 0.6931472
    %v54 = vlaneseq
    %v55 = vshrl.u32 %v54, 7
    %v56 = vsub.s32 0, %v55
    %v57 = vrot.slane %v40, %v56
    %v59 = vmul.f32 %v57, %v39
    %v60 = vsel %vm41, %v59, 0.0
    %61 = vadd.xlane.f32.xlu0 %v60
    %v62 = vpop.xlane.xlu0 %61
    %v63 = vmul.f32 %v59, %v45
    %v64 = vsel %vm41, %v63, 0.0
    %65 = vadd.xlane.f32.xlu0 %v64
    %v66 = vpop.xlane.xlu0 %65
    %v67 = vmul.f32 %v52, %v62
    %v68 = vsub.f32 %v67, %v66
    %vm69 = vcmask 7168
    %70 = vst.msk [vmem:[%s3] sm:$0xff] %vm69, %v68
    // Predicated region
    $region22: #{tpu_custom_call.1} parent=1 // pred_check
      _
    $region23: #{tpu_custom_call.1} parent=1 // pred_check_branch
      %72 = sbr.rel (0) target = $region25
    $region24: #{tpu_custom_call.1} parent=1 // pred_region
      _
    $region25: #{tpu_custom_call.1} parent=1 // pred_fallthru
      _
    // Predicated region
    $region26: #{tpu_custom_call.1} parent=1 // pred_check
      _
    $region27: #{tpu_custom_call.1} parent=1 // pred_check_branch
      %74 = sbr.rel (0) target = $region29
    $region28: #{tpu_custom_call.1} parent=1 // pred_region
      _
    $region29: #{tpu_custom_call.1} parent=1 // pred_fallthru
      _
    %75 = vsyncpa [#allocation3], 1
    %76 = vsyncpa [#allocation5], 1

</llo_original>
